<compile_context>
chip_gen: v5e
topology: v5e:2x2
jax: 0.10.0
libtpu: 0.0.40
codegen_flags: <defaults>
</compile_context>

<pallas_src>
import functools

import jax
import jax.numpy as jnp
from jax.experimental import pallas as pl
from jax.experimental.pallas import tpu as pltpu


def _round_up(v, m):
    return (v + m - 1) // m * m


def _lora_kernel(x_ref, a_ref, b_ref, o_ref, *, scaling, compute_dtype):
    # x_ref: (TM, Kp)  tile of flattened activations (original dtype)
    # a_ref: (Kp, R)   lora_A (VMEM-resident, compute_dtype)
    # b_ref: (R,  Np)  lora_B (VMEM-resident, compute_dtype)
    # o_ref: (TM, Np)  output tile
    x = x_ref[...].astype(compute_dtype)                 # in-kernel cast, no extra HBM pass
    xa = jnp.dot(x, a_ref[...],
                 preferred_element_type=jnp.float32)     # (TM, R) on MXU, f32 acc
    xa = xa * scaling                                    # scale tiny intermediate in f32
    out = jnp.dot(xa.astype(compute_dtype), b_ref[...],
                  preferred_element_type=jnp.float32)    # (TM, Np) on MXU, f32 acc
    o_ref[...] = out.astype(o_ref.dtype)


def lora_forward(x, lora_A, lora_B, scaling, *, tm=512, use_bf16=False,
                 vmem_tile_budget_bytes=12 << 20):
    """x: (..., K). lora_A: (K, R). lora_B: (R, N). Returns (..., N)."""
    orig_shape = x.shape
    out_dtype = x.dtype
    K = orig_shape[-1]
    R = lora_A.shape[1]
    N = lora_B.shape[1]
    M = 1
    for d in orig_shape[:-1]:
        M *= d
    x2 = x.reshape(M, K)

    # --- lane padding only in the rare non-multiple-of-128 case -------------
    Kp = _round_up(K, 128)
    Np = _round_up(N, 128)
    if Kp != K:
        x2 = jnp.pad(x2, ((0, 0), (0, Kp - K)))
        lora_A = jnp.pad(lora_A, ((0, Kp - K), (0, 0)))
    if Np != N:
        lora_B = jnp.pad(lora_B, ((0, 0), (0, Np - N)))

    # bf16 results differ from the f32 reference beyond 1e-4 (mixed precision).
    compute_dtype = jnp.bfloat16 if use_bf16 else x2.dtype
    a = lora_A.astype(compute_dtype)   # tiny; host cast is fine
    b = lora_B.astype(compute_dtype)

    # --- M tile: multiple of 16 (bf16 sublane packing), VMEM-budgeted so the
    # double-buffered x/out tiles fit even the smallest scoped VMEM defaults.
    tile_mult = 16
    in_sz = jnp.dtype(x2.dtype).itemsize
    out_sz = jnp.dtype(out_dtype).itemsize
    tm = _round_up(max(tile_mult, min(tm, _round_up(M, tile_mult))), tile_mult)
    while tm > tile_mult and 2 * tm * (Kp * in_sz + Np * out_sz) > vmem_tile_budget_bytes:
        tm = _round_up(tm // 2, tile_mult)

    # Ragged last M block handled by Pallas; no host pad / slice over M.
    grid = (pl.cdiv(M, tm),)

    kernel = functools.partial(_lora_kernel, scaling=float(scaling),
                               compute_dtype=compute_dtype)

    a_sz = jnp.dtype(a.dtype).itemsize
    b_sz = jnp.dtype(b.dtype).itemsize
    cost = pl.CostEstimate(
        flops=2 * M * Kp * R + 2 * M * R * Np,
        transcendentals=0,
        bytes_accessed=(M * Kp * in_sz + Kp * R * a_sz + R * Np * b_sz
                        + M * Np * out_sz),
    )

    out = pl.pallas_call(
        kernel,
        out_shape=jax.ShapeDtypeStruct((M, Np), out_dtype),
        grid_spec=pltpu.PrefetchScalarGridSpec(
            num_scalar_prefetch=0,
            grid=grid,
            in_specs=[
                pl.BlockSpec((tm, Kp), lambda i: (i, 0)),   # x tile (M-tiled)
                pl.BlockSpec((Kp, R), lambda i: (0, 0)),    # lora_A (VMEM-resident)
                pl.BlockSpec((R, Np), lambda i: (0, 0)),    # lora_B (VMEM-resident)
            ],
            out_specs=pl.BlockSpec((tm, Np), lambda i: (i, 0)),
        ),
        compiler_params=pltpu.CompilerParams(
            dimension_semantics=("parallel",)),
        cost_estimate=cost,
    )(x2, a, b)

    if Np != N:
        out = out[:, :N]
    return out.reshape(*orig_shape[:-1], N)


def reference_forward(x, lora_A, lora_B, scaling):
    """Pure-JAX reference mirroring the PyTorch forward exactly."""
    return x @ (lora_A @ lora_B) * scaling


if __name__ == "__main__":
    # small config consistent with the module: batch=2, seq=8, hidden=32
    B, S = 2, 8
    in_features, out_features = 32, 32
    rank, alpha = 4, 16
    scaling = alpha / rank

    key = jax.random.PRNGKey(0)
    k_x, k_a, k_b = jax.random.split(key, 3)

    x = jax.random.normal(k_x, (B, S, in_features), jnp.float32)
    # note: the module inits lora_B to zeros (output trivially 0); use
    # non-zero deterministic values so the math is actually exercised.
    lora_A = jax.random.normal(k_a, (in_features, rank), jnp.float32) * 0.1
    lora_B = jax.random.normal(k_b, (rank, out_features), jnp.float32) * 0.1

    out = lora_forward(x, lora_A, lora_B, scaling)
    out = jax.block_until_ready(out)

    ref = reference_forward(x, lora_A, lora_B, scaling)
    assert out.shape == (B, S, out_features), out.shape
    assert jnp.allclose(out, ref, atol=1e-4, rtol=1e-4), "mismatch vs reference"

    print("KERNEL_OK")
</pallas_src>

<mosaic_0001>
module attributes {stable_mosaic.version = 11 : i64} {
  func.func @_lora_kernel(%arg0: i32, %arg1: memref<16x128xf32, #tpu.memory_space<vmem>>, %arg2: memref<128x4xf32, #tpu.memory_space<vmem>>, %arg3: memref<4x128xf32, #tpu.memory_space<vmem>>, %arg4: memref<16x128xf32, #tpu.memory_space<vmem>>) attributes {dimension_semantics = [#tpu.dimension_semantics<parallel>], iteration_bounds = array<i64: 1>, scalar_prefetch = 0 : i64, scratch_operands = 0 : i64, tpu.core_type = #tpu.core_type<tc>, window_params = [{transform_indices = @transform_0, window_bounds = array<i64: 16, 128>}, {pipeline_mode = #tpu.pipeline_mode<synchronous>, transform_indices = @transform_1, window_bounds = array<i64: 128, 4>}, {pipeline_mode = #tpu.pipeline_mode<synchronous>, transform_indices = @transform_2, window_bounds = array<i64: 4, 128>}, {transform_indices = @transform_3, window_bounds = array<i64: 16, 128>}]} {
    %c0 = arith.constant 0 : index
    %c0_0 = arith.constant 0 : index
    %0 = vector.load %arg1[%c0, %c0_0] : memref<16x128xf32, #tpu.memory_space<vmem>>, vector<16x128xf32>
    %c0_1 = arith.constant 0 : index
    %c0_2 = arith.constant 0 : index
    %1 = vector.load %arg2[%c0_1, %c0_2] : memref<128x4xf32, #tpu.memory_space<vmem>>, vector<128x4xf32>
    %cst = arith.constant dense<0.000000e+00> : vector<16x4xf32>
    %2 = tpu.matmul %0, %1, %cst {dimension_numbers = #tpu.dot_dimension_numbers<[1], [0], [0], [1], [0, 0, 1, 1], [], []>} : vector<16x128xf32>, vector<128x4xf32>, vector<16x4xf32> -> vector<16x4xf32>
    %cst_3 = arith.constant 4.000000e+00 : f32
    %3 = vector.broadcast %cst_3 : f32 to vector<16x4xf32>
    %4 = arith.mulf %2, %3 : vector<16x4xf32>
    %c0_4 = arith.constant 0 : index
    %c0_5 = arith.constant 0 : index
    %5 = vector.load %arg3[%c0_4, %c0_5] : memref<4x128xf32, #tpu.memory_space<vmem>>, vector<4x128xf32>
    %cst_6 = arith.constant dense<0.000000e+00> : vector<16x128xf32>
    %6 = tpu.matmul %4, %5, %cst_6 {dimension_numbers = #tpu.dot_dimension_numbers<[1], [0], [0], [1], [0, 0, 1, 1], [], []>} : vector<16x4xf32>, vector<4x128xf32>, vector<16x128xf32> -> vector<16x128xf32>
    %c0_7 = arith.constant 0 : index
    %c0_8 = arith.constant 0 : index
    %7 = vector.load %arg4[%c0_7, %c0_8] : memref<16x128xf32, #tpu.memory_space<vmem>>, vector<16x128xf32>
    tpu.vector_store %arg4[%c0_7, %c0_8], %6 {strides = array<i32>} : memref<16x128xf32, #tpu.memory_space<vmem>>, vector<16x128xf32>,
    return
  }
  func.func @transform_0(%arg0: i32) -> (i32, i32) {
    %c0_i32 = arith.constant 0 : i32
    %c0_i32_0 = arith.constant 0 : i32
    return %arg0, %c0_i32 : i32, i32
  }
  func.func @transform_1(%arg0: i32) -> (i32, i32) {
    %c0_i32 = arith.constant 0 : i32
    %c0_i32_0 = arith.constant 0 : i32
    %c0_i32_1 = arith.constant 0 : i32
    return %c0_i32, %c0_i32_0 : i32, i32
  }
  func.func @transform_2(%arg0: i32) -> (i32, i32) {
    %c0_i32 = arith.constant 0 : i32
    %c0_i32_0 = arith.constant 0 : i32
    %c0_i32_1 = arith.constant 0 : i32
    return %c0_i32, %c0_i32_0 : i32, i32
  }
  func.func @transform_3(%arg0: i32) -> (i32, i32) {
    %c0_i32 = arith.constant 0 : i32
    %c0_i32_0 = arith.constant 0 : i32
    return %arg0, %c0_i32 : i32, i32
  }
}

</mosaic_0001>

<llo_original>
// kernel: tpu_custom_call.1
$region0: #{tpu_custom_call.1}
  #allocation0 [shape = 'u32[]', space=smem, size = 0x4, offset = 0x4, fixed_abs, tag = 'smem constant byte address 0x4 - core index']
  #allocation1 [shape = 'u32[72,128]{1,0:T(1,128)}', space=vmem, size = 0x9000, scoped, tag = 'internal scratch']
  %s0 = inlined_call_operand.vmem [shape: f32[16,128], index: 0, kind: input, shape index: {}]
  %s1 = inlined_call_operand.vmem [shape: f32[128,4], index: 1, kind: input, shape index: {}]
  %s2 = inlined_call_operand.vmem [shape: f32[4,128], index: 2, kind: input, shape index: {}]
  %s3 = inlined_call_operand.hbm [shape: f32[16,128], index: 3, kind: output, shape index: {}]
  %s4 = sld [smem:[#allocation0]]
  $region22: #{tpu_custom_call.1} parent=0
    _
  %s6 = ssub.s32 1, %s4
  %s7 = scalar_select 0, %s6, %s4
  $region1: #{tpu_custom_call.1} parent=0
    #allocation2 [shape = 'u8[8192]{0}', space=vmem, size = 0x2000, scoped, tag = 'output window, operand 0, single buffered']
    #allocation3 [shape = 's32[1]{0}', space=sflag, size = 0x4, scoped, tag = 'scoped memory for tpu_custom_call.1']
    %8 = vsyncpa [#allocation3], 0
    // Predicated region
    $region2: #{tpu_custom_call.1} parent=1 // pred_check
      _
    $region3: #{tpu_custom_call.1} parent=1 // pred_check_branch
      %10 = sbr.rel (0) target = $region5
    $region4: #{tpu_custom_call.1} parent=1 // pred_region
      _
    $region5: #{tpu_custom_call.1} parent=1 // pred_fallthru
      _
    // Predicated region
    $region6: #{tpu_custom_call.1} parent=1 // pred_check
      _
    $region7: #{tpu_custom_call.1} parent=1 // pred_check_branch
      %12 = sbr.rel (0) target = $region9
    $region8: #{tpu_custom_call.1} parent=1 // pred_region
      _
    $region9: #{tpu_custom_call.1} parent=1 // pred_fallthru
      _
    // Predicated region
    $region10: #{tpu_custom_call.1} parent=1 // pred_check
      _
    $region11: #{tpu_custom_call.1} parent=1 // pred_check_branch
      %14 = sbr.rel (0) target = $region13
    $region12: #{tpu_custom_call.1} parent=1 // pred_region
      _
    $region13: #{tpu_custom_call.1} parent=1 // pred_fallthru
      _
    %v15 = vld [vmem:[%s0] sm:$0xff]
    %v16 = vld [vmem:[%s0 + $0x8] sm:$0xff]
    %v17 = vld [vmem:[%s1] sm:$0xff]
    %v18 = vld [vmem:[%s1 + $0x8] sm:$0xff]
    %v19 = vld [vmem:[%s1 + $0x10] sm:$0xff]
    %v20 = vld [vmem:[%s1 + $0x18] sm:$0xff]
    %v21 = vld [vmem:[%s1 + $0x20] sm:$0xff]
    %v22 = vld [vmem:[%s1 + $0x28] sm:$0xff]
    %v23 = vld [vmem:[%s1 + $0x30] sm:$0xff]
    %v24 = vld [vmem:[%s1 + $0x38] sm:$0xff]
    %v25 = vld [vmem:[%s1 + $0x40] sm:$0xff]
    %v26 = vld [vmem:[%s1 + $0x48] sm:$0xff]
    %v27 = vld [vmem:[%s1 + $0x50] sm:$0xff]
    %v28 = vld [vmem:[%s1 + $0x58] sm:$0xff]
    %v29 = vld [vmem:[%s1 + $0x60] sm:$0xff]
    %v30 = vld [vmem:[%s1 + $0x68] sm:$0xff]
    %v31 = vld [vmem:[%s1 + $0x70] sm:$0xff]
    %v32 = vld [vmem:[%s1 + $0x78] sm:$0xff]
    %33 = vmatpush.msra.mxu0 %v32
    %34 = vmatpush.msra.mxu0 %v31
    %35 = vmatpush.msra.mxu0 %v30
    %36 = vmatpush.msra.mxu0 %v29
    %37 = vmatpush.msra.mxu0 %v28
    %38 = vmatpush.msra.mxu0 %v27
    %39 = vmatpush.msra.mxu0 %v26
    %40 = vmatpush.msra.mxu0 %v25
    %41 = vmatpush.msra.mxu0 %v24
    %42 = vmatpush.msra.mxu0 %v23
    %43 = vmatpush.msra.mxu0 %v22
    %44 = vmatpush.msra.mxu0 %v21
    %45 = vmatpush.msra.mxu0 %v20
    %46 = vmatpush.msra.mxu0 %v19
    %47 = vmatpush.msra.mxu0 %v18
    %48 = vmatpush.msra.mxu0 %v17
    %49 = vmatmul.f32.gmra.mxu0 %v15
    %v50 = vpop.f32.mrf.mxu0
    %v51 = vadd.f32 0.0, %v50
    %52 = vmatmul.f32.gmra.mxu0 %v16
    %v53 = vpop.f32.mrf.mxu0
    %v54 = vadd.f32 0.0, %v53
    %55 = vdwg.mxu0
    %v56 = vmul.f32 %v51, 4.0
    %v57 = vmul.f32 %v54, 4.0
    %v58 = vld [vmem:[%s2] sm:$0xf]
    %vm59 = vcmask 31744
    %v61 = vsel %vm59, %v56, 0
    %v64 = vsel %vm59, %v57, 0
    %vm66 = vcmask 1043456
    %v68 = vsel %vm66, %v58, 0
    %70 = vmatpush.msra.mxu0 0.0
    %71 = vmatpush.msra.mxu0 0.0
    %72 = vmatpush.msra.mxu0 0.0
    %73 = vmatpush.msra.mxu0 0.0
    %74 = vmatpush.msra.mxu0 0.0
    %75 = vmatpush.msra.mxu0 0.0
    %76 = vmatpush.msra.mxu0 0.0
    %77 = vmatpush.msra.mxu0 0.0
    %78 = vmatpush.msra.mxu0 0.0
    %79 = vmatpush.msra.mxu0 0.0
    %80 = vmatpush.msra.mxu0 0.0
    %81 = vmatpush.msra.mxu0 0.0
    %82 = vmatpush.msra.mxu0 0.0
    %83 = vmatpush.msra.mxu0 0.0
    %84 = vmatpush.msra.mxu0 0.0
    %85 = vmatpush.msra.mxu0 %v68
    %86 = vmatmul.f32.gmra.mxu0 %v61
    %v87 = vpop.f32.mrf.mxu0
    %v88 = vadd.f32 0.0, %v87
    %89 = vmatmul.f32.gmra.mxu0 %v64
    %v90 = vpop.f32.mrf.mxu0
    %v91 = vadd.f32 0.0, %v90
    %92 = vdwg.mxu0
    %93 = vst [vmem:[#allocation2] sm:$0xff] %v88
    %94 = vst [vmem:[#allocation2 + $0x8] sm:$0xff] %v91
    // Predicated region
    $region14: #{tpu_custom_call.1} parent=1 // pred_check
      _
    $region15: #{tpu_custom_call.1} parent=1 // pred_check_branch
      %96 = sbr.rel (0) target = $region17
    $region16: #{tpu_custom_call.1} parent=1 // pred_region
      %98 = vsyncadd [#allocation3], 0
      %s99 = sshll.u32 [#allocation2], 4
      %s100 = int_to_ptr.vmem [resolvable:$true] %s99
      %s101 = sshll.u32 %s3, 4
      %s102 = int_to_ptr.hbm [resolvable:$true] %s101
      %107 = dma.vmem_to_hbm [thread:$0]  %s100, 256, %s102, [#allocation3], 128, 128, 8
    $region17: #{tpu_custom_call.1} parent=1 // pred_fallthru
      _
    // Predicated region
    $region18: #{tpu_custom_call.1} parent=1 // pred_check
      _
    $region19: #{tpu_custom_call.1} parent=1 // pred_check_branch
      %109 = sbr.rel (0) target = $region21
    $region20: #{tpu_custom_call.1} parent=1 // pred_region
      %111 = dma.done [#allocation3], 256
    $region21: #{tpu_custom_call.1} parent=1 // pred_fallthru
      _
    %112 = vsyncpa [#allocation3], 1

</llo_original>
